<compile_context>
chip_gen: v7x
topology: tpu7x:2x2x1
jax: 0.10.0
libtpu: 0.0.40
codegen_flags: <defaults>
</compile_context>

<pallas_src>
import functools

import jax
import jax.numpy as jnp
from jax import lax
from jax.experimental import pallas as pl
from jax.experimental.pallas import tpu as pltpu


def _round_up(x, m):
    return (x + m - 1) // m * m


# Tap order must match the weight K layout built in the wrapper:
# t = (dy + 1) * 3 + (dx + 1)  ==  ky * 3 + kx  of the HWIO kernel.
_TAPS = tuple((dy, dx) for dy in (-1, 0, 1) for dx in (-1, 0, 1))


def _res_block_kernel(x_ref, w1_ref, b1_ref, w2_ref, b2_ref, mask_ref, o_ref,
                      p1_ref, p2_ref, *, H, W, B):
    """One grid step = B images stacked along the lane axis.

    x_ref   : (B, Cp, S)          channel-padded NCHW input, flattened spatial
    w1_ref  : (Co, 9*Cp)          conv1 weights (BN1 folded), tap-major K
    b1_ref  : (Co, 1)             folded conv1 bias + BN1 shift
    w2_ref  : (Co, 9*Co + Cp)     conv2 weights (BN2 folded) ++ 1x1 residual
    b2_ref  : (Co, 1)             folded conv2+BN2 bias + residual bias
    mask_ref: (8, B*S)            rows 0..3: dy=-1 / dy=+1 / dx=-1 / dx=+1 valid
    o_ref   : (B, Co, S)          lane-dense output
    p1_ref  : (9*Cp, B*S)         im2col scratch for conv1
    p2_ref  : (9*Co + Cp, B*S)    im2col scratch for conv2 + residual tap
    """
    Cp = x_ref.shape[1]
    Co = o_ref.shape[1]
    S = H * W
    L = B * S

    m_up, m_dn = mask_ref[0:1, :], mask_ref[1:2, :]
    m_lt, m_rt = mask_ref[2:3, :], mask_ref[3:4, :]

    def combine(dy, dx):
        m = None
        if dy == -1:
            m = m_up
        elif dy == 1:
            m = m_dn
        if dx == -1:
            m = m_lt if m is None else m * m_lt
        elif dx == 1:
            m = m_rt if m is None else m * m_rt
        return m

    tap_masks = [combine(dy, dx) for dy, dx in _TAPS]

    def fill_taps(patch_ref, img, rows):
        # Each tap: one XLU lane-roll of the whole (rows, L) image + 0/1 mask,
        # stored at an 8-aligned sublane offset of the K-major patch scratch.
        # Cross-row / cross-image lanes brought in by the circular roll are
        # exactly the masked-out lanes, so the roll may cross image boundaries.
        for t, (dy, dx) in enumerate(_TAPS):
            d = dy * W + dx
            piece = pltpu.roll(img, (-d) % L, axis=1) if d != 0 else img
            m = tap_masks[t]
            if m is not None:
                piece = piece * m
            patch_ref[t * rows:(t + 1) * rows, :] = piece

    # Stack the B images of this step along the lane axis: (Cp, B*S).
    if B == 1:
        xcat = x_ref[0]
    else:
        xcat = jnp.concatenate([x_ref[b] for b in range(B)], axis=1)

    # ---- conv1 (3x3) + folded BN1 + ReLU : one (Co, 9*Cp) x (9*Cp, L) matmul ----
    fill_taps(p1_ref, xcat, Cp)
    h1 = jnp.dot(w1_ref[...], p1_ref[...], preferred_element_type=jnp.float32)
    h1 = jnp.maximum(h1 + b1_ref[...], 0.0)                          # (Co, L)

    # ---- conv2 (3x3) + folded BN2, 1x1 residual fused as the last Cp K rows ----
    fill_taps(p2_ref, h1, Co)
    p2_ref[9 * Co:9 * Co + Cp, :] = xcat                             # residual tap
    h2 = jnp.dot(w2_ref[...], p2_ref[...], preferred_element_type=jnp.float32)
    h2 = jnp.maximum(h2 + b2_ref[...], 0.0)                          # (Co, L)

    for b in range(B):
        o_ref[b] = h2[:, b * S:(b + 1) * S].astype(o_ref.dtype)


def residual_conv_block(x_nchw, params, *, images_per_step=None):
    """Forward pass of ResidualConvBlock. x_nchw: (N, Cin, H, W) f32 -> (N, Cout, H, W)."""
    N, Cin, H, W = x_nchw.shape
    Cout = params["w1"].shape[-1]
    eps = 1e-5
    S = H * W

    Cp = _round_up(Cin, 8)        # input-channel group padded to a full sublane tile
    Co = _round_up(Cout, 8)       # output-channel group padded to a full sublane tile
    K1 = 9 * Cp
    K2 = 9 * Co + Cp

    # Images per grid step.  Keep >= 2 grid steps when possible so v7x's two
    # TensorCores can each take part of the batch via the "parallel" grid axis.
    if images_per_step is None:
        B = max(1, min(8, N // 2))
    else:
        B = max(1, min(int(images_per_step), N))
    G = pl.cdiv(N, B)
    Np = G * B
    L = B * S

    # ---- fold inference-mode BN into the conv weights and biases ----
    s1 = params["g1"] / jnp.sqrt(params["v1"] + eps)
    s2 = params["g2"] / jnp.sqrt(params["v2"] + eps)

    # HWIO (3,3,Ci,Co) -> (Co, tap, Ci); tap-major K, zero-padded to tiled groups.
    w1t = jnp.transpose(params["w1"] * s1[None, None, None, :], (3, 0, 1, 2)).reshape(Cout, 9, Cin)
    w1k = jnp.zeros((Co, 9, Cp), jnp.float32).at[:Cout, :, :Cin].set(w1t).reshape(Co, K1)

    w2t = jnp.transpose(params["w2"] * s2[None, None, None, :], (3, 0, 1, 2)).reshape(Cout, 9, Cout)
    w2k = jnp.zeros((Co, 9, Co), jnp.float32).at[:Cout, :, :Cout].set(w2t).reshape(Co, 9 * Co)
    wres = jnp.zeros((Co, Cp), jnp.float32).at[:Cout, :Cin].set(jnp.transpose(params["wres"]))
    w2full = jnp.concatenate([w2k, wres], axis=1)                    # (Co, K2)

    b1k = jnp.zeros((Co,), jnp.float32).at[:Cout].set(
        s1 * (params["b1"] - params["m1"]) + params["be1"]).reshape(Co, 1)
    b2k = jnp.zeros((Co,), jnp.float32).at[:Cout].set(
        s2 * (params["b2"] - params["m2"]) + params["be2"] + params["bres"]).reshape(Co, 1)

    # Packed boundary masks, one tile-aligned (8, L) input:
    #   row 0: dy=-1 valid, row 1: dy=+1 valid, row 2: dx=-1 valid, row 3: dx=+1 valid.
    pos = jnp.arange(S, dtype=jnp.int32)
    row, col = pos // W, pos % W
    ones = jnp.ones((S,), jnp.float32)
    masks = jnp.tile(
        jnp.stack([(row >= 1).astype(jnp.float32), (row <= H - 2).astype(jnp.float32),
                   (col >= 1).astype(jnp.float32), (col <= W - 2).astype(jnp.float32),
                   ones, ones, ones, ones], axis=0),
        (1, B))                                                      # (8, B*S)

    # Free reshape (row-major NCHW is already (N, C, H*W)-contiguous); pad the
    # channel axis to Cp and the batch to a multiple of B.
    x_flat = x_nchw.reshape(N, Cin, S)
    if Cp == Cin and Np == N:
        x_in = x_flat
    else:
        x_in = jnp.zeros((Np, Cp, S), jnp.float32).at[:N, :Cin, :].set(x_flat)

    kernel = functools.partial(_res_block_kernel, H=H, W=W, B=B)
    out_flat = pl.pallas_call(
        kernel,
        out_shape=jax.ShapeDtypeStruct((Np, Co, S), jnp.float32),
        grid=(G,),
        in_specs=[
            pl.BlockSpec((B, Cp, S), lambda g: (g, 0, 0)),
            pl.BlockSpec((Co, K1), lambda g: (0, 0)),
            pl.BlockSpec((Co, 1), lambda g: (0, 0)),
            pl.BlockSpec((Co, K2), lambda g: (0, 0)),
            pl.BlockSpec((Co, 1), lambda g: (0, 0)),
            pl.BlockSpec((8, L), lambda g: (0, 0)),
        ],
        out_specs=pl.BlockSpec((B, Co, S), lambda g: (g, 0, 0)),
        scratch_shapes=[
            pltpu.VMEM((K1, L), jnp.float32),
            pltpu.VMEM((K2, L), jnp.float32),
        ],
        compiler_params=pltpu.CompilerParams(dimension_semantics=("parallel",)),
    )(x_in, w1k, b1k, w2full, b2k, masks)

    return out_flat[:N, :Cout, :].reshape(N, Cout, H, W)


def make_params(key, in_channels, out_channels):
    """Deterministic synthetic parameters matching the PyTorch module's shapes."""
    ks = jax.random.split(key, 8)
    p = {
        # conv1: (3,3,Cin,Cout) == PyTorch (Cout,Cin,3,3) transposed to HWIO
        "w1": 0.1 * jax.random.normal(ks[0], (3, 3, in_channels, out_channels), jnp.float32),
        "b1": 0.1 * jax.random.normal(ks[1], (out_channels,), jnp.float32),
        "g1": 1.0 + 0.1 * jax.random.normal(ks[2], (out_channels,), jnp.float32),
        "be1": 0.1 * jax.random.normal(ks[3], (out_channels,), jnp.float32),
        "m1": jnp.zeros((out_channels,), jnp.float32),
        "v1": jnp.ones((out_channels,), jnp.float32),
        "w2": 0.1 * jax.random.normal(ks[4], (3, 3, out_channels, out_channels), jnp.float32),
        "b2": 0.1 * jax.random.normal(ks[5], (out_channels,), jnp.float32),
        "g2": 1.0 + 0.1 * jax.random.normal(ks[6], (out_channels,), jnp.float32),
        "be2": 0.1 * jax.random.normal(ks[7], (out_channels,), jnp.float32),
        "m2": jnp.zeros((out_channels,), jnp.float32),
        "v2": jnp.ones((out_channels,), jnp.float32),
    }
    if in_channels != out_channels:
        kr = jax.random.split(ks[0], 2)
        p["wres"] = 0.1 * jax.random.normal(kr[0], (in_channels, out_channels), jnp.float32)
        p["bres"] = 0.1 * jax.random.normal(kr[1], (out_channels,), jnp.float32)
    else:  # nn.Identity() residual
        p["wres"] = jnp.eye(in_channels, dtype=jnp.float32)
        p["bres"] = jnp.zeros((out_channels,), jnp.float32)
    return p


def _reference(x_nchw, params):
    """Pure-JAX (XLA conv) reference for validation."""
    eps = 1e-5

    def conv(x, w_hwio, b):  # NCHW input, HWIO weights
        y = lax.conv_general_dilated(
            x, w_hwio, window_strides=(1, 1), padding="SAME",
            dimension_numbers=("NCHW", "HWIO", "NCHW"))
        return y + b.reshape(1, -1, 1, 1)

    def bn(x, g, be, m, v):
        return (x - m.reshape(1, -1, 1, 1)) / jnp.sqrt(v.reshape(1, -1, 1, 1) + eps) \
            * g.reshape(1, -1, 1, 1) + be.reshape(1, -1, 1, 1)

    res = lax.conv_general_dilated(
        x_nchw, params["wres"][None, None], (1, 1), "SAME",
        dimension_numbers=("NCHW", "HWIO", "NCHW")) + params["bres"].reshape(1, -1, 1, 1)
    out = conv(x_nchw, params["w1"], params["b1"])
    out = jax.nn.relu(bn(out, params["g1"], params["be1"], params["m1"], params["v1"]))
    out = conv(out, params["w2"], params["b2"])
    out = bn(out, params["g2"], params["be2"], params["m2"], params["v2"])
    return jax.nn.relu(out + res)


if __name__ == "__main__":
    key = jax.random.PRNGKey(0)
    kx, kp = jax.random.split(key)

    N, Cin, Cout, H, W = 2, 4, 8, 16, 16
    x = jax.random.normal(kx, (N, Cin, H, W), jnp.float32)
    params = make_params(kp, Cin, Cout)

    out = jax.block_until_ready(residual_conv_block(x, params))
    ref = jax.block_until_ready(_reference(x, params))

    assert out.shape == (N, Cout, H, W)
    err = float(jnp.max(jnp.abs(out - ref)))
    assert jnp.allclose(out, ref, atol=1e-4, rtol=1e-4), err

    print("KERNEL_OK")
</pallas_src>

<mosaic_0001>
module attributes {stable_mosaic.version = 11 : i64} {
  func.func @_res_block_kernel(%arg0: i32, %arg1: memref<1x8x256xf32, #tpu.memory_space<vmem>>, %arg2: memref<8x72xf32, #tpu.memory_space<vmem>>, %arg3: memref<8x1xf32, #tpu.memory_space<vmem>>, %arg4: memref<8x80xf32, #tpu.memory_space<vmem>>, %arg5: memref<8x1xf32, #tpu.memory_space<vmem>>, %arg6: memref<8x256xf32, #tpu.memory_space<vmem>>, %arg7: memref<1x8x256xf32, #tpu.memory_space<vmem>>, %arg8: memref<72x256xf32, #tpu.memory_space<vmem>>, %arg9: memref<80x256xf32, #tpu.memory_space<vmem>>) attributes {dimension_semantics = [#tpu.dimension_semantics<parallel>], iteration_bounds = array<i64: 2>, scalar_prefetch = 0 : i64, scratch_operands = 2 : i64, tpu.core_type = #tpu.core_type<tc>, window_params = [{transform_indices = @transform_0, window_bounds = array<i64: 1, 8, 256>}, {pipeline_mode = #tpu.pipeline_mode<synchronous>, transform_indices = @transform_1, window_bounds = array<i64: 8, 72>}, {pipeline_mode = #tpu.pipeline_mode<synchronous>, transform_indices = @transform_2, window_bounds = array<i64: 8, 1>}, {pipeline_mode = #tpu.pipeline_mode<synchronous>, transform_indices = @transform_3, window_bounds = array<i64: 8, 80>}, {pipeline_mode = #tpu.pipeline_mode<synchronous>, transform_indices = @transform_4, window_bounds = array<i64: 8, 1>}, {pipeline_mode = #tpu.pipeline_mode<synchronous>, transform_indices = @transform_5, window_bounds = array<i64: 8, 256>}, {transform_indices = @transform_6, window_bounds = array<i64: 1, 8, 256>}]} {
    %c0 = arith.constant 0 : index
    %c0_0 = arith.constant 0 : index
    %0 = vector.load %arg6[%c0, %c0_0] : memref<8x256xf32, #tpu.memory_space<vmem>>, vector<1x256xf32>
    %c1 = arith.constant 1 : index
    %c0_1 = arith.constant 0 : index
    %1 = vector.load %arg6[%c1, %c0_1] : memref<8x256xf32, #tpu.memory_space<vmem>>, vector<1x256xf32>
    %c2 = arith.constant 2 : index
    %c0_2 = arith.constant 0 : index
    %2 = vector.load %arg6[%c2, %c0_2] : memref<8x256xf32, #tpu.memory_space<vmem>>, vector<1x256xf32>
    %c3 = arith.constant 3 : index
    %c0_3 = arith.constant 0 : index
    %3 = vector.load %arg6[%c3, %c0_3] : memref<8x256xf32, #tpu.memory_space<vmem>>, vector<1x256xf32>
    %4 = arith.mulf %0, %2 : vector<1x256xf32>
    %5 = arith.mulf %0, %3 : vector<1x256xf32>
    %6 = arith.mulf %1, %2 : vector<1x256xf32>
    %7 = arith.mulf %1, %3 : vector<1x256xf32>
    %c0_4 = arith.constant 0 : index
    %c0_5 = arith.constant 0 : index
    %c0_6 = arith.constant 0 : index
    %8 = vector.load %arg1[%c0_4, %c0_5, %c0_6] : memref<1x8x256xf32, #tpu.memory_space<vmem>>, vector<1x8x256xf32>
    %9 = vector.shape_cast %8 : vector<1x8x256xf32> to vector<8x256xf32>
    %c17_i32 = arith.constant 17 : i32
    %10 = tpu.dynamic_rotate %9 by %c17_i32 dim 1 : vector<8x256xf32>, i32 -> vector<8x256xf32>
    %11 = vector.broadcast %4 : vector<1x256xf32> to vector<8x256xf32>
    %12 = arith.mulf %10, %11 : vector<8x256xf32>
    %c0_7 = arith.constant 0 : index
    %c0_8 = arith.constant 0 : index
    %13 = vector.load %arg8[%c0_7, %c0_8] : memref<72x256xf32, #tpu.memory_space<vmem>>, vector<8x256xf32>
    tpu.vector_store %arg8[%c0_7, %c0_8], %12 {strides = array<i32>} : memref<72x256xf32, #tpu.memory_space<vmem>>, vector<8x256xf32>,
    %c16_i32 = arith.constant 16 : i32
    %14 = tpu.dynamic_rotate %9 by %c16_i32 dim 1 : vector<8x256xf32>, i32 -> vector<8x256xf32>
    %15 = vector.broadcast %0 : vector<1x256xf32> to vector<8x256xf32>
    %16 = arith.mulf %14, %15 : vector<8x256xf32>
    %c8 = arith.constant 8 : index
    %c0_9 = arith.constant 0 : index
    %17 = vector.load %arg8[%c8, %c0_9] : memref<72x256xf32, #tpu.memory_space<vmem>>, vector<8x256xf32>
    tpu.vector_store %arg8[%c8, %c0_9], %16 {strides = array<i32>} : memref<72x256xf32, #tpu.memory_space<vmem>>, vector<8x256xf32>,
    %c15_i32 = arith.constant 15 : i32
    %18 = tpu.dynamic_rotate %9 by %c15_i32 dim 1 : vector<8x256xf32>, i32 -> vector<8x256xf32>
    %19 = vector.broadcast %5 : vector<1x256xf32> to vector<8x256xf32>
    %20 = arith.mulf %18, %19 : vector<8x256xf32>
    %c16 = arith.constant 16 : index
    %c0_10 = arith.constant 0 : index
    %21 = vector.load %arg8[%c16, %c0_10] : memref<72x256xf32, #tpu.memory_space<vmem>>, vector<8x256xf32>
    tpu.vector_store %arg8[%c16, %c0_10], %20 {strides = array<i32>} : memref<72x256xf32, #tpu.memory_space<vmem>>, vector<8x256xf32>,
    %c1_i32 = arith.constant 1 : i32
    %22 = tpu.dynamic_rotate %9 by %c1_i32 dim 1 : vector<8x256xf32>, i32 -> vector<8x256xf32>
    %23 = vector.broadcast %2 : vector<1x256xf32> to vector<8x256xf32>
    %24 = arith.mulf %22, %23 : vector<8x256xf32>
    %c24 = arith.constant 24 : index
    %c0_11 = arith.constant 0 : index
    %25 = vector.load %arg8[%c24, %c0_11] : memref<72x256xf32, #tpu.memory_space<vmem>>, vector<8x256xf32>
    tpu.vector_store %arg8[%c24, %c0_11], %24 {strides = array<i32>} : memref<72x256xf32, #tpu.memory_space<vmem>>, vector<8x256xf32>,
    %c32 = arith.constant 32 : index
    %c0_12 = arith.constant 0 : index
    %26 = vector.load %arg8[%c32, %c0_12] : memref<72x256xf32, #tpu.memory_space<vmem>>, vector<8x256xf32>
    tpu.vector_store %arg8[%c32, %c0_12], %9 {strides = array<i32>} : memref<72x256xf32, #tpu.memory_space<vmem>>, vector<8x256xf32>,
    %c255_i32 = arith.constant 255 : i32
    %27 = tpu.dynamic_rotate %9 by %c255_i32 dim 1 : vector<8x256xf32>, i32 -> vector<8x256xf32>
    %28 = vector.broadcast %3 : vector<1x256xf32> to vector<8x256xf32>
    %29 = arith.mulf %27, %28 : vector<8x256xf32>
    %c40 = arith.constant 40 : index
    %c0_13 = arith.constant 0 : index
    %30 = vector.load %arg8[%c40, %c0_13] : memref<72x256xf32, #tpu.memory_space<vmem>>, vector<8x256xf32>
    tpu.vector_store %arg8[%c40, %c0_13], %29 {strides = array<i32>} : memref<72x256xf32, #tpu.memory_space<vmem>>, vector<8x256xf32>,
    %c241_i32 = arith.constant 241 : i32
    %31 = tpu.dynamic_rotate %9 by %c241_i32 dim 1 : vector<8x256xf32>, i32 -> vector<8x256xf32>
    %32 = vector.broadcast %6 : vector<1x256xf32> to vector<8x256xf32>
    %33 = arith.mulf %31, %32 : vector<8x256xf32>
    %c48 = arith.constant 48 : index
    %c0_14 = arith.constant 0 : index
    %34 = vector.load %arg8[%c48, %c0_14] : memref<72x256xf32, #tpu.memory_space<vmem>>, vector<8x256xf32>
    tpu.vector_store %arg8[%c48, %c0_14], %33 {strides = array<i32>} : memref<72x256xf32, #tpu.memory_space<vmem>>, vector<8x256xf32>,
    %c240_i32 = arith.constant 240 : i32
    %35 = tpu.dynamic_rotate %9 by %c240_i32 dim 1 : vector<8x256xf32>, i32 -> vector<8x256xf32>
    %36 = vector.broadcast %1 : vector<1x256xf32> to vector<8x256xf32>
    %37 = arith.mulf %35, %36 : vector<8x256xf32>
    %c56 = arith.constant 56 : index
    %c0_15 = arith.constant 0 : index
    %38 = vector.load %arg8[%c56, %c0_15] : memref<72x256xf32, #tpu.memory_space<vmem>>, vector<8x256xf32>
    tpu.vector_store %arg8[%c56, %c0_15], %37 {strides = array<i32>} : memref<72x256xf32, #tpu.memory_space<vmem>>, vector<8x256xf32>,
    %c239_i32 = arith.constant 239 : i32
    %39 = tpu.dynamic_rotate %9 by %c239_i32 dim 1 : vector<8x256xf32>, i32 -> vector<8x256xf32>
    %40 = vector.broadcast %7 : vector<1x256xf32> to vector<8x256xf32>
    %41 = arith.mulf %39, %40 : vector<8x256xf32>
    %c64 = arith.constant 64 : index
    %c0_16 = arith.constant 0 : index
    %42 = vector.load %arg8[%c64, %c0_16] : memref<72x256xf32, #tpu.memory_space<vmem>>, vector<8x256xf32>
    tpu.vector_store %arg8[%c64, %c0_16], %41 {strides = array<i32>} : memref<72x256xf32, #tpu.memory_space<vmem>>, vector<8x256xf32>,
    %c0_17 = arith.constant 0 : index
    %c0_18 = arith.constant 0 : index
    %43 = vector.load %arg2[%c0_17, %c0_18] : memref<8x72xf32, #tpu.memory_space<vmem>>, vector<8x72xf32>
    %c0_19 = arith.constant 0 : index
    %c0_20 = arith.constant 0 : index
    %44 = vector.load %arg8[%c0_19, %c0_20] : memref<72x256xf32, #tpu.memory_space<vmem>>, vector<72x256xf32>
    %cst = arith.constant dense<0.000000e+00> : vector<8x256xf32>
    %45 = tpu.matmul %43, %44, %cst {dimension_numbers = #tpu.dot_dimension_numbers<[1], [0], [0], [1], [0, 0, 1, 1], [], []>} : vector<8x72xf32>, vector<72x256xf32>, vector<8x256xf32> -> vector<8x256xf32>
    %c0_21 = arith.constant 0 : index
    %c0_22 = arith.constant 0 : index
    %46 = vector.load %arg3[%c0_21, %c0_22] : memref<8x1xf32, #tpu.memory_space<vmem>>, vector<8x1xf32>
    %47 = vector.broadcast %46 : vector<8x1xf32> to vector<8x256xf32>
    %48 = arith.addf %45, %47 : vector<8x256xf32>
    %cst_23 = arith.constant 0.000000e+00 : f32
    %49 = vector.broadcast %cst_23 : f32 to vector<8x256xf32>
    %50 = arith.maximumf %48, %49 : vector<8x256xf32>
    %c17_i32_24 = arith.constant 17 : i32
    %51 = tpu.dynamic_rotate %50 by %c17_i32_24 dim 1 : vector<8x256xf32>, i32 -> vector<8x256xf32>
    %52 = vector.broadcast %4 : vector<1x256xf32> to vector<8x256xf32>
    %53 = arith.mulf %51, %52 : vector<8x256xf32>
    %c0_25 = arith.constant 0 : index
    %c0_26 = arith.constant 0 : index
    %54 = vector.load %arg9[%c0_25, %c0_26] : memref<80x256xf32, #tpu.memory_space<vmem>>, vector<8x256xf32>
    tpu.vector_store %arg9[%c0_25, %c0_26], %53 {strides = array<i32>} : memref<80x256xf32, #tpu.memory_space<vmem>>, vector<8x256xf32>,
    %c16_i32_27 = arith.constant 16 : i32
    %55 = tpu.dynamic_rotate %50 by %c16_i32_27 dim 1 : vector<8x256xf32>, i32 -> vector<8x256xf32>
    %56 = vector.broadcast %0 : vector<1x256xf32> to vector<8x256xf32>
    %57 = arith.mulf %55, %56 : vector<8x256xf32>
    %c8_28 = arith.constant 8 : index
    %c0_29 = arith.constant 0 : index
    %58 = vector.load %arg9[%c8_28, %c0_29] : memref<80x256xf32, #tpu.memory_space<vmem>>, vector<8x256xf32>
    tpu.vector_store %arg9[%c8_28, %c0_29], %57 {strides = array<i32>} : memref<80x256xf32, #tpu.memory_space<vmem>>, vector<8x256xf32>,
    %c15_i32_30 = arith.constant 15 : i32
    %59 = tpu.dynamic_rotate %50 by %c15_i32_30 dim 1 : vector<8x256xf32>, i32 -> vector<8x256xf32>
    %60 = vector.broadcast %5 : vector<1x256xf32> to vector<8x256xf32>
    %61 = arith.mulf %59, %60 : vector<8x256xf32>
    %c16_31 = arith.constant 16 : index
    %c0_32 = arith.constant 0 : index
    %62 = vector.load %arg9[%c16_31, %c0_32] : memref<80x256xf32, #tpu.memory_space<vmem>>, vector<8x256xf32>
    tpu.vector_store %arg9[%c16_31, %c0_32], %61 {strides = array<i32>} : memref<80x256xf32, #tpu.memory_space<vmem>>, vector<8x256xf32>,
    %c1_i32_33 = arith.constant 1 : i32
    %63 = tpu.dynamic_rotate %50 by %c1_i32_33 dim 1 : vector<8x256xf32>, i32 -> vector<8x256xf32>
    %64 = vector.broadcast %2 : vector<1x256xf32> to vector<8x256xf32>
    %65 = arith.mulf %63, %64 : vector<8x256xf32>
    %c24_34 = arith.constant 24 : index
    %c0_35 = arith.constant 0 : index
    %66 = vector.load %arg9[%c24_34, %c0_35] : memref<80x256xf32, #tpu.memory_space<vmem>>, vector<8x256xf32>
    tpu.vector_store %arg9[%c24_34, %c0_35], %65 {strides = array<i32>} : memref<80x256xf32, #tpu.memory_space<vmem>>, vector<8x256xf32>,
    %c32_36 = arith.constant 32 : index
    %c0_37 = arith.constant 0 : index
    %67 = vector.load %arg9[%c32_36, %c0_37] : memref<80x256xf32, #tpu.memory_space<vmem>>, vector<8x256xf32>
    tpu.vector_store %arg9[%c32_36, %c0_37], %50 {strides = array<i32>} : memref<80x256xf32, #tpu.memory_space<vmem>>, vector<8x256xf32>,
    %c255_i32_38 = arith.constant 255 : i32
    %68 = tpu.dynamic_rotate %50 by %c255_i32_38 dim 1 : vector<8x256xf32>, i32 -> vector<8x256xf32>
    %69 = vector.broadcast %3 : vector<1x256xf32> to vector<8x256xf32>
    %70 = arith.mulf %68, %69 : vector<8x256xf32>
    %c40_39 = arith.constant 40 : index
    %c0_40 = arith.constant 0 : index
    %71 = vector.load %arg9[%c40_39, %c0_40] : memref<80x256xf32, #tpu.memory_space<vmem>>, vector<8x256xf32>
    tpu.vector_store %arg9[%c40_39, %c0_40], %70 {strides = array<i32>} : memref<80x256xf32, #tpu.memory_space<vmem>>, vector<8x256xf32>,
    %c241_i32_41 = arith.constant 241 : i32
    %72 = tpu.dynamic_rotate %50 by %c241_i32_41 dim 1 : vector<8x256xf32>, i32 -> vector<8x256xf32>
    %73 = vector.broadcast %6 : vector<1x256xf32> to vector<8x256xf32>
    %74 = arith.mulf %72, %73 : vector<8x256xf32>
    %c48_42 = arith.constant 48 : index
    %c0_43 = arith.constant 0 : index
    %75 = vector.load %arg9[%c48_42, %c0_43] : memref<80x256xf32, #tpu.memory_space<vmem>>, vector<8x256xf32>
    tpu.vector_store %arg9[%c48_42, %c0_43], %74 {strides = array<i32>} : memref<80x256xf32, #tpu.memory_space<vmem>>, vector<8x256xf32>,
    %c240_i32_44 = arith.constant 240 : i32
    %76 = tpu.dynamic_rotate %50 by %c240_i32_44 dim 1 : vector<8x256xf32>, i32 -> vector<8x256xf32>
    %77 = vector.broadcast %1 : vector<1x256xf32> to vector<8x256xf32>
    %78 = arith.mulf %76, %77 : vector<8x256xf32>
    %c56_45 = arith.constant 56 : index
    %c0_46 = arith.constant 0 : index
    %79 = vector.load %arg9[%c56_45, %c0_46] : memref<80x256xf32, #tpu.memory_space<vmem>>, vector<8x256xf32>
    tpu.vector_store %arg9[%c56_45, %c0_46], %78 {strides = array<i32>} : memref<80x256xf32, #tpu.memory_space<vmem>>, vector<8x256xf32>,
    %c239_i32_47 = arith.constant 239 : i32
    %80 = tpu.dynamic_rotate %50 by %c239_i32_47 dim 1 : vector<8x256xf32>, i32 -> vector<8x256xf32>
    %81 = vector.broadcast %7 : vector<1x256xf32> to vector<8x256xf32>
    %82 = arith.mulf %80, %81 : vector<8x256xf32>
    %c64_48 = arith.constant 64 : index
    %c0_49 = arith.constant 0 : index
    %83 = vector.load %arg9[%c64_48, %c0_49] : memref<80x256xf32, #tpu.memory_space<vmem>>, vector<8x256xf32>
    tpu.vector_store %arg9[%c64_48, %c0_49], %82 {strides = array<i32>} : memref<80x256xf32, #tpu.memory_space<vmem>>, vector<8x256xf32>,
    %c72 = arith.constant 72 : index
    %c0_50 = arith.constant 0 : index
    %84 = vector.load %arg9[%c72, %c0_50] : memref<80x256xf32, #tpu.memory_space<vmem>>, vector<8x256xf32>
    tpu.vector_store %arg9[%c72, %c0_50], %9 {strides = array<i32>} : memref<80x256xf32, #tpu.memory_space<vmem>>, vector<8x256xf32>,
    %c0_51 = arith.constant 0 : index
    %c0_52 = arith.constant 0 : index
    %85 = vector.load %arg4[%c0_51, %c0_52] : memref<8x80xf32, #tpu.memory_space<vmem>>, vector<8x80xf32>
    %c0_53 = arith.constant 0 : index
    %c0_54 = arith.constant 0 : index
    %86 = vector.load %arg9[%c0_53, %c0_54] : memref<80x256xf32, #tpu.memory_space<vmem>>, vector<80x256xf32>
    %cst_55 = arith.constant dense<0.000000e+00> : vector<8x256xf32>
    %87 = tpu.matmul %85, %86, %cst_55 {dimension_numbers = #tpu.dot_dimension_numbers<[1], [0], [0], [1], [0, 0, 1, 1], [], []>} : vector<8x80xf32>, vector<80x256xf32>, vector<8x256xf32> -> vector<8x256xf32>
    %c0_56 = arith.constant 0 : index
    %c0_57 = arith.constant 0 : index
    %88 = vector.load %arg5[%c0_56, %c0_57] : memref<8x1xf32, #tpu.memory_space<vmem>>, vector<8x1xf32>
    %89 = vector.broadcast %88 : vector<8x1xf32> to vector<8x256xf32>
    %90 = arith.addf %87, %89 : vector<8x256xf32>
    %cst_58 = arith.constant 0.000000e+00 : f32
    %91 = vector.broadcast %cst_58 : f32 to vector<8x256xf32>
    %92 = arith.maximumf %90, %91 : vector<8x256xf32>
    %c0_59 = arith.constant 0 : index
    %c0_60 = arith.constant 0 : index
    %c0_61 = arith.constant 0 : index
    %93 = vector.load %arg7[%c0_59, %c0_60, %c0_61] : memref<1x8x256xf32, #tpu.memory_space<vmem>>, vector<1x8x256xf32>
    %94 = vector.shape_cast %93 : vector<1x8x256xf32> to vector<8x256xf32>
    %95 = vector.shape_cast %92 : vector<8x256xf32> to vector<1x8x256xf32>
    tpu.vector_store %arg7[%c0_59, %c0_60, %c0_61], %95 {strides = array<i32>} : memref<1x8x256xf32, #tpu.memory_space<vmem>>, vector<1x8x256xf32>,
    return
  }
  func.func @transform_0(%arg0: i32) -> (i32, i32, i32) {
    %c0_i32 = arith.constant 0 : i32
    %c0_i32_0 = arith.constant 0 : i32
    %c0_i32_1 = arith.constant 0 : i32
    return %arg0, %c0_i32, %c0_i32_0 : i32, i32, i32
  }
  func.func @transform_1(%arg0: i32) -> (i32, i32) {
    %c0_i32 = arith.constant 0 : i32
    %c0_i32_0 = arith.constant 0 : i32
    %c0_i32_1 = arith.constant 0 : i32
    return %c0_i32, %c0_i32_0 : i32, i32
  }
  func.func @transform_2(%arg0: i32) -> (i32, i32) {
    %c0_i32 = arith.constant 0 : i32
    %c0_i32_0 = arith.constant 0 : i32
    %c0_i32_1 = arith.constant 0 : i32
    return %c0_i32, %c0_i32_0 : i32, i32
  }
  func.func @transform_3(%arg0: i32) -> (i32, i32) {
    %c0_i32 = arith.constant 0 : i32
    %c0_i32_0 = arith.constant 0 : i32
    %c0_i32_1 = arith.constant 0 : i32
    return %c0_i32, %c0_i32_0 : i32, i32
  }
  func.func @transform_4(%arg0: i32) -> (i32, i32) {
    %c0_i32 = arith.constant 0 : i32
    %c0_i32_0 = arith.constant 0 : i32
    %c0_i32_1 = arith.constant 0 : i32
    return %c0_i32, %c0_i32_0 : i32, i32
  }
  func.func @transform_5(%arg0: i32) -> (i32, i32) {
    %c0_i32 = arith.constant 0 : i32
    %c0_i32_0 = arith.constant 0 : i32
    %c0_i32_1 = arith.constant 0 : i32
    return %c0_i32, %c0_i32_0 : i32, i32
  }
  func.func @transform_6(%arg0: i32) -> (i32, i32, i32) {
    %c0_i32 = arith.constant 0 : i32
    %c0_i32_0 = arith.constant 0 : i32
    %c0_i32_1 = arith.constant 0 : i32
    return %arg0, %c0_i32, %c0_i32_0 : i32, i32, i32
  }
}

</mosaic_0001>

<llo_original>
// kernel: tpu_custom_call.1
$region0: #{tpu_custom_call.1}
  #allocation0 [shape = 'u32[]', space=smem, size = 0x4, offset = 0x4, fixed_abs, tag = 'smem constant byte address 0x4 - core index']
  #allocation1 [shape = 'u32[144,128]{1,0:T(1,128)}', space=vmem, size = 0x12000, scoped, tag = 'internal scratch']
  #allocation2 [shape = 'f32[72,256]{1,0:T(8,128)}', space=vmem, size = 0x12000, scoped, tag = 'scratch operand']
  #allocation3 [shape = 'f32[80,256]{1,0:T(8,128)}', space=vmem, size = 0x14000, scoped, tag = 'scratch operand']
  %s0 = inlined_call_operand.hbm [shape: f32[2,8,256], index: 0, kind: input, shape index: {}]
  %s1 = inlined_call_operand.vmem [shape: f32[8,72], index: 1, kind: input, shape index: {}]
  %s2 = inlined_call_operand.vmem [shape: f32[8,1], index: 2, kind: input, shape index: {}]
  %s3 = inlined_call_operand.vmem [shape: f32[8,80], index: 3, kind: input, shape index: {}]
  %s4 = inlined_call_operand.vmem [shape: f32[8,1], index: 4, kind: input, shape index: {}]
  %s5 = inlined_call_operand.vmem [shape: f32[8,256], index: 5, kind: input, shape index: {}]
  %s6 = inlined_call_operand.hbm [shape: f32[2,8,256], index: 6, kind: output, shape index: {}]
  %s7 = sld [smem:[#allocation0]]
  $region61: #{tpu_custom_call.1} parent=0
    _
  %s9 = ssub.s32 1, %s7
  %s10 = scalar_select 0, %s9, %s7
  $region1: #{tpu_custom_call.1} parent=0
    #allocation4 [shape = 'u8[16384]{0}', space=vmem, size = 0x4000, scoped, tag = 'input window, operand 0']
    #allocation5 [shape = 's32[2]{0}', space=sflag, size = 0x8, scoped, tag = 'scoped memory for tpu_custom_call.1']
    #allocation6 [shape = 's32[2]{0}', space=sflag, size = 0x8, scoped, tag = 'scoped memory for tpu_custom_call.1']
    #allocation7 [shape = 'u8[16384]{0}', space=vmem, size = 0x4000, scoped, tag = 'output window, operand 0']
    %11 = vsyncpa [#allocation5], 0
    %s12 = scalar_lea.sflag [#allocation5], 1
    %13 = vsyncpa %s12, 0
    %14 = vsyncpa [#allocation6], 0
    %s15 = scalar_lea.sflag [#allocation6], 1
    %16 = vsyncpa %s15, 0
    loop: start=0, step=1, limit=4
    $region2: #{tpu_custom_call.1} parent=1 // loop_pre_header
      _
    $region3: #{tpu_custom_call.1} parent=1 // loop_header
      %s18 = sphi 0, %s22
      %p19 = scmp.ge.s32.totalorder %s18, 4
      %s28 = sphi 0, %s30
      %s31 = sphi 0, %s28
      %s32 = sphi 0, %s31
      %s48 = sphi 0, %s32
      %s52 = sphi 0, %s52
      %s54 = sphi 0, %s52
      %s55 = sphi 0, %s54
      %s69 = sphi 0, %s55
      %s73 = sphi 0, %s73
      %s75 = sphi 0, %s73
      %s76 = sphi 0, %s75
      %s90 = sphi 0, %s76
      %s94 = sphi 0, %s94
      %s96 = sphi 0, %s94
      %s97 = sphi 0, %s96
      %s111 = sphi 0, %s97
      %s115 = sphi 0, %s115
      %s117 = sphi 0, %s115
      %s118 = sphi 0, %s117
      %s132 = sphi 0, %s118
      %s136 = sphi 0, %s136
      %s138 = sphi 0, %s136
      %s139 = sphi 0, %s138
      %s153 = sphi 0, %s139
      %s159 = sphi 0, %s161
      %s162 = sphi 0, %s159
      %s163 = sphi 0, %s162
      %s179 = sphi 0, %s163
    $region4: #{tpu_custom_call.1} parent=1 // loop_header_branch
      %21 = sbr.rel (%p19) target = $region8
    $region5: #{tpu_custom_call.1} parent=1 // loop_body
      %s23 = ssub.s32 %s18, 1
      %s24 = ssub.s32 %s18, 2
      %s25 = sadd.s32 %s18, 1
      %s26 = ssub.s32 %s18, %s25
      %p27 = scmp.eq.s32.totalorder %s26, 0
      %s29 = sadd.s32 %s28, 1
      %s30 = scalar_select %p27, %s28, %s29
      %p33 = pneg %p27
      %p34 = scmp.eq.s32.totalorder %s18, 1
      %p35 = por %p33, %p34
      %p36 = scmp.ne.s32.totalorder %s28, %s31
      %p37 = scmp.eq.s32.totalorder %s18, 0
      %p38 = por %p36, %p37
      %p39 = scmp.ne.s32.totalorder %s28, %s31
      %p40 = scmp.eq.s32.totalorder %s23, 1
      %p41 = por %p39, %p40
      %p42 = scmp.ne.s32.totalorder %s31, %s32
      %p43 = scmp.eq.s32.totalorder %s23, 0
      %p44 = por %p42, %p43
      %p45 = scmp.ne.s32.totalorder %s31, %s32
      %p46 = scmp.eq.s32.totalorder %s24, 1
      %p47 = por %p45, %p46
      %p49 = scmp.ne.s32.totalorder %s32, %s48
      %p50 = scmp.eq.s32.totalorder %s24, 0
      %p51 = por %p49, %p50
      %s53 = sadd.s32 %s52, 1
      %p56 = scmp.eq.s32.totalorder %s18, 1
      %p57 = scmp.ne.s32.totalorder %s52, %s54
      %p58 = scmp.eq.s32.totalorder %s18, 0
      %p59 = por %p57, %p58
      %p60 = scmp.ne.s32.totalorder %s52, %s54
      %p61 = scmp.eq.s32.totalorder %s23, 1
      %p62 = por %p60, %p61
      %p63 = scmp.ne.s32.totalorder %s54, %s55
      %p64 = scmp.eq.s32.totalorder %s23, 0
      %p65 = por %p63, %p64
      %p66 = scmp.ne.s32.totalorder %s54, %s55
      %p67 = scmp.eq.s32.totalorder %s24, 1
      %p68 = por %p66, %p67
      %p70 = scmp.ne.s32.totalorder %s55, %s69
      %p71 = scmp.eq.s32.totalorder %s24, 0
      %p72 = por %p70, %p71
      %s74 = sadd.s32 %s73, 1
      %p77 = scmp.eq.s32.totalorder %s18, 1
      %p78 = scmp.ne.s32.totalorder %s73, %s75
      %p79 = scmp.eq.s32.totalorder %s18, 0
      %p80 = por %p78, %p79
      %p81 = scmp.ne.s32.totalorder %s73, %s75
      %p82 = scmp.eq.s32.totalorder %s23, 1
      %p83 = por %p81, %p82
      %p84 = scmp.ne.s32.totalorder %s75, %s76
      %p85 = scmp.eq.s32.totalorder %s23, 0
      %p86 = por %p84, %p85
      %p87 = scmp.ne.s32.totalorder %s75, %s76
      %p88 = scmp.eq.s32.totalorder %s24, 1
      %p89 = por %p87, %p88
      %p91 = scmp.ne.s32.totalorder %s76, %s90
      %p92 = scmp.eq.s32.totalorder %s24, 0
      %p93 = por %p91, %p92
      %s95 = sadd.s32 %s94, 1
      %p98 = scmp.eq.s32.totalorder %s18, 1
      %p99 = scmp.ne.s32.totalorder %s94, %s96
      %p100 = scmp.eq.s32.totalorder %s18, 0
      %p101 = por %p99, %p100
      %p102 = scmp.ne.s32.totalorder %s94, %s96
      %p103 = scmp.eq.s32.totalorder %s23, 1
      %p104 = por %p102, %p103
      %p105 = scmp.ne.s32.totalorder %s96, %s97
      %p106 = scmp.eq.s32.totalorder %s23, 0
      %p107 = por %p105, %p106
      %p108 = scmp.ne.s32.totalorder %s96, %s97
      %p109 = scmp.eq.s32.totalorder %s24, 1
      %p110 = por %p108, %p109
      %p112 = scmp.ne.s32.totalorder %s97, %s111
      %p113 = scmp.eq.s32.totalorder %s24, 0
      %p114 = por %p112, %p113
      %s116 = sadd.s32 %s115, 1
      %p119 = scmp.eq.s32.totalorder %s18, 1
      %p120 = scmp.ne.s32.totalorder %s115, %s117
      %p121 = scmp.eq.s32.totalorder %s18, 0
      %p122 = por %p120, %p121
      %p123 = scmp.ne.s32.totalorder %s115, %s117
      %p124 = scmp.eq.s32.totalorder %s23, 1
      %p125 = por %p123, %p124
      %p126 = scmp.ne.s32.totalorder %s117, %s118
      %p127 = scmp.eq.s32.totalorder %s23, 0
      %p128 = por %p126, %p127
      %p129 = scmp.ne.s32.totalorder %s117, %s118
      %p130 = scmp.eq.s32.totalorder %s24, 1
      %p131 = por %p129, %p130
      %p133 = scmp.ne.s32.totalorder %s118, %s132
      %p134 = scmp.eq.s32.totalorder %s24, 0
      %p135 = por %p133, %p134
      %s137 = sadd.s32 %s136, 1
      %p140 = scmp.eq.s32.totalorder %s18, 1
      %p141 = scmp.ne.s32.totalorder %s136, %s138
      %p142 = scmp.eq.s32.totalorder %s18, 0
      %p143 = por %p141, %p142
      %p144 = scmp.ne.s32.totalorder %s136, %s138
      %p145 = scmp.eq.s32.totalorder %s23, 1
      %p146 = por %p144, %p145
      %p147 = scmp.ne.s32.totalorder %s138, %s139
      %p148 = scmp.eq.s32.totalorder %s23, 0
      %p149 = por %p147, %p148
      %p150 = scmp.ne.s32.totalorder %s138, %s139
      %p151 = scmp.eq.s32.totalorder %s24, 1
      %p152 = por %p150, %p151
      %p154 = scmp.ne.s32.totalorder %s139, %s153
      %p155 = scmp.eq.s32.totalorder %s24, 0
      %p156 = por %p154, %p155
      %s157 = ssub.s32 %s18, %s25
      %p158 = scmp.eq.s32.totalorder %s157, 0
      %s160 = sadd.s32 %s159, 1
      %s161 = scalar_select %p158, %s159, %s160
      %p164 = pneg %p158
      %p165 = scmp.eq.s32.totalorder %s18, 1
      %p166 = por %p164, %p165
      %p167 = scmp.ne.s32.totalorder %s159, %s162
      %p168 = scmp.eq.s32.totalorder %s18, 0
      %p169 = por %p167, %p168
      %p170 = scmp.ne.s32.totalorder %s159, %s162
      %p171 = scmp.eq.s32.totalorder %s23, 1
      %p172 = por %p170, %p171
      %p173 = scmp.ne.s32.totalorder %s162, %s163
      %p174 = scmp.eq.s32.totalorder %s23, 0
      %p175 = por %p173, %p174
      %p176 = scmp.ne.s32.totalorder %s162, %s163
      %p177 = scmp.eq.s32.totalorder %s24, 1
      %p178 = por %p176, %p177
      %p180 = scmp.ne.s32.totalorder %s163, %s179
      %p181 = scmp.eq.s32.totalorder %s24, 0
      %p182 = por %p180, %p181
      %p183 = scmp.le.s32.totalorder 1, %s18
      %p184 = scmp.lt.s32.totalorder %s18, 3
      %p185 = pnand %p183, %p184
      %p186 = pneg %p185
      // Predicated region
      $region9: #{tpu_custom_call.1} parent=5 // pred_check
        _
      $region10: #{tpu_custom_call.1} parent=5 // pred_check_branch
        %188 = sbr.rel (%p185) target = $region12
      $region11: #{tpu_custom_call.1} parent=5 // pred_region
        %s189 = ssub.s32 %s18, 1
        // Predicated region
        $region13: #{tpu_custom_call.1} parent=11 // pred_check
          %p190 = pneg %p65
        $region14: #{tpu_custom_call.1} parent=11 // pred_check_branch
          %192 = sbr.rel (%p190) target = $region16
        $region15: #{tpu_custom_call.1} parent=11 // pred_region
          _
        $region16: #{tpu_custom_call.1} parent=11 // pred_fallthru
          _
        // Predicated region
        $region17: #{tpu_custom_call.1} parent=11 // pred_check
          %p193 = pneg %p86
        $region18: #{tpu_custom_call.1} parent=11 // pred_check_branch
          %195 = sbr.rel (%p193) target = $region20
        $region19: #{tpu_custom_call.1} parent=11 // pred_region
          _
        $region20: #{tpu_custom_call.1} parent=11 // pred_fallthru
          _
        // Predicated region
        $region21: #{tpu_custom_call.1} parent=11 // pred_check
          %p196 = pneg %p107
        $region22: #{tpu_custom_call.1} parent=11 // pred_check_branch
          %198 = sbr.rel (%p196) target = $region24
        $region23: #{tpu_custom_call.1} parent=11 // pred_region
          _
        $region24: #{tpu_custom_call.1} parent=11 // pred_fallthru
          _
        // Predicated region
        $region25: #{tpu_custom_call.1} parent=11 // pred_check
          %p199 = pneg %p128
        $region26: #{tpu_custom_call.1} parent=11 // pred_check_branch
          %201 = sbr.rel (%p199) target = $region28
        $region27: #{tpu_custom_call.1} parent=11 // pred_region
          _
        $region28: #{tpu_custom_call.1} parent=11 // pred_fallthru
          _
        // Predicated region
        $region29: #{tpu_custom_call.1} parent=11 // pred_check
          %p202 = pneg %p149
        $region30: #{tpu_custom_call.1} parent=11 // pred_check_branch
          %204 = sbr.rel (%p202) target = $region32
        $region31: #{tpu_custom_call.1} parent=11 // pred_region
          _
        $region32: #{tpu_custom_call.1} parent=11 // pred_fallthru
          _
      $region12: #{tpu_custom_call.1} parent=5 // pred_fallthru
        _
      %p205 = scmp.lt.s32.totalorder %s18, 2
      // Predicated region
      $region33: #{tpu_custom_call.1} parent=5 // pred_check
        %p206 = pneg %p205
      $region34: #{tpu_custom_call.1} parent=5 // pred_check_branch
        %208 = sbr.rel (%p206) target = $region36
      $region35: #{tpu_custom_call.1} parent=5 // pred_region
        // Predicated region
        $region37: #{tpu_custom_call.1} parent=35 // pred_check
          %p209 = pneg %p38
        $region38: #{tpu_custom_call.1} parent=35 // pred_check_branch
          %211 = sbr.rel (%p209) target = $region40
        $region39: #{tpu_custom_call.1} parent=35 // pred_region
          %s212 = sand.u32 %s28, 1
          %s213 = scalar_lea.sflag [#allocation5], %s212
          %s214 = sand.u32 %s28, 1
          %s215 = smul.addr %s214, 16
          %s216 = scalar_lea.vmem [#allocation4], %s215
          %s218 = ssub.s32 256, 256
          %219 = vsyncadd %s213, %s218
          %s220 = smul.addr %s18, 2
          %s221 = smul.addr %s220, 128
          %s222 = scalar_lea.hbm %s0, %s221
          %s224 = sshll.u32 %s216, 4
          %s225 = int_to_ptr.vmem [resolvable:$true] %s224
          %227 = dma.hbm_to_vmem [thread:$0]  %s222, 256, %s225, %s213
        $region40: #{tpu_custom_call.1} parent=35 // pred_fallthru
          _
      $region36: #{tpu_custom_call.1} parent=5 // pred_fallthru
        _
      %p228 = scmp.le.s32.totalorder 1, %s18
      %p229 = scmp.lt.s32.totalorder %s18, 3
      %p230 = pnand %p228, %p229
      %p231 = pneg %p230
      // Predicated region
      $region41: #{tpu_custom_call.1} parent=5 // pred_check
        _
      $region42: #{tpu_custom_call.1} parent=5 // pred_check_branch
        %233 = sbr.rel (%p230) target = $region44
      $region43: #{tpu_custom_call.1} parent=5 // pred_region
        %s234 = ssub.s32 %s18, 1
        %s235 = sand.u32 %s31, 1
        %s236 = scalar_lea.sflag [#allocation5], %s235
        %s237 = sand.u32 %s31, 1
        %s238 = smul.addr %s237, 16
        %s239 = scalar_lea.vmem [#allocation4], %s238
        // Predicated region
        $region45: #{tpu_custom_call.1} parent=43 // pred_check
          %p240 = pneg %p44
        $region46: #{tpu_custom_call.1} parent=43 // pred_check_branch
          %242 = sbr.rel (%p240) target = $region48
        $region47: #{tpu_custom_call.1} parent=43 // pred_region
          %243 = dma.done %s236, 256
        $region48: #{tpu_custom_call.1} parent=43 // pred_fallthru
          _
        %s244 = sand.u32 %s31, 1
        %s245 = scalar_lea.sflag [#allocation5], %s244
        %s246 = sand.u32 %s31, 1
        %s247 = smul.addr %s246, 16
        %s248 = scalar_lea.vmem [#allocation4], %s247
        %p249 = pneg %p44
        %p250 = pneg %p41
        %p251 = pneg %p65
        %p252 = pneg %p62
        %p253 = pneg %p86
        %p254 = pneg %p83
        %p255 = pneg %p107
        %p256 = pneg %p104
        %p257 = pneg %p128
        %p258 = pneg %p125
        %p259 = pneg %p149
        %p260 = pneg %p146
        %p261 = pneg %p175
        %p262 = pneg %p172
        %s263 = sand.u32 %s162, 1
        %s264 = scalar_lea.sflag [#allocation6], %s263
        %s265 = sand.u32 %s162, 1
        %s266 = smul.addr %s265, 16
        %s267 = scalar_lea.vmem [#allocation7], %s266
        %v268 = vld [vmem:[%s5] ss:$8 sm:$0x3]
        %s269 = scalar_lea.vmem %s5, 1
        %v270 = vld [vmem:[%s269] ss:$8 sm:$0x3]
        %s271 = scalar_lea.vmem %s5, 2
        %v272 = vld [vmem:[%s271] ss:$8 sm:$0x3]
        %s273 = scalar_lea.vmem %s5, 3
        %v274 = vld [vmem:[%s273] ss:$8 sm:$0x3]
        %v275 = vmul.f32 %v268, %v272
        %v276 = vmul.f32 %v268, %v274
        %v277 = vmul.f32 %v270, %v272
        %v278 = vmul.f32 %v270, %v274
        %v279 = vld [vmem:[%s239] sm:$0xff]
        %v280 = vld [vmem:[%s239 + $0x8] sm:$0xff]
        %281 = vrot.lane.b32.xlu0 %v279, 17
        %v282 = vpop.permute.xlu0 %281
        %283 = vrot.lane.b32.xlu0 %v280, 17
        %v284 = vpop.permute.xlu0 %283
        %v285 = vlaneseq
        %v286 = vand.u32 %v285, 127
        %vm287 = vcmp.lt.s32.totalorder %v286, 17
        %v288 = vsel %vm287, %v282, %v284
        %v289 = vsel %vm287, %v284, %v282
        %v291 = vlaneseq
        %v292 = vshrl.u32 %v291, 7
        %v293 = vsub.s32 0, %v292
        %v294 = vrot.slane %v275, %v293
        %v295 = vlaneseq
        %v296 = vshrl.u32 %v295, 7
        %v297 = vsub.s32 1, %v296
        %v298 = vrot.slane %v275, %v297
        %v301 = vmul.f32 %v289, %v294
        %v302 = vmul.f32 %v288, %v298
        %303 = vst [vmem:[#allocation2] sm:$0xff] %v301
        %304 = vst [vmem:[#allocation2 + $0x8] sm:$0xff] %v302
        %305 = vrot.lane.b32.xlu0 %v279, 16
        %v306 = vpop.permute.xlu0 %305
        %307 = vrot.lane.b32.xlu0 %v280, 16
        %v308 = vpop.permute.xlu0 %307
        %vm309 = vcmp.lt.s32.totalorder %v286, 16
        %v310 = vsel %vm309, %v306, %v308
        %v311 = vsel %vm309, %v308, %v306
        %v313 = vlaneseq
        %v314 = vshrl.u32 %v313, 7
        %v315 = vsub.s32 0, %v314
        %v316 = vrot.slane %v268, %v315
        %v317 = vlaneseq
        %v318 = vshrl.u32 %v317, 7
        %v319 = vsub.s32 1, %v318
        %v320 = vrot.slane %v268, %v319
        %v323 = vmul.f32 %v311, %v316
        %v324 = vmul.f32 %v310, %v320
        %325 = vst [vmem:[#allocation2 + $0x10] sm:$0xff] %v323
        %326 = vst [vmem:[#allocation2 + $0x18] sm:$0xff] %v324
        %327 = vrot.lane.b32.xlu0 %v279, 15
        %v328 = vpop.permute.xlu0 %327
        %329 = vrot.lane.b32.xlu0 %v280, 15
        %v330 = vpop.permute.xlu0 %329
        %vm331 = vcmp.lt.s32.totalorder %v286, 15
        %v332 = vsel %vm331, %v328, %v330
        %v333 = vsel %vm331, %v330, %v328
        %v335 = vlaneseq
        %v336 = vshrl.u32 %v335, 7
        %v337 = vsub.s32 0, %v336
        %v338 = vrot.slane %v276, %v337
        %v339 = vlaneseq
        %v340 = vshrl.u32 %v339, 7
        %v341 = vsub.s32 1, %v340
        %v342 = vrot.slane %v276, %v341
        %v345 = vmul.f32 %v333, %v338
        %v346 = vmul.f32 %v332, %v342
        %347 = vst [vmem:[#allocation2 + $0x20] sm:$0xff] %v345
        %348 = vst [vmem:[#allocation2 + $0x28] sm:$0xff] %v346
        %349 = vrot.lane.b32.xlu0 %v279, 1
        %v350 = vpop.permute.xlu0 %349
        %351 = vrot.lane.b32.xlu0 %v280, 1
        %v352 = vpop.permute.xlu0 %351
        %vm353 = vcmp.lt.s32.totalorder %v286, 1
        %v354 = vsel %vm353, %v350, %v352
        %v355 = vsel %vm353, %v352, %v350
        %v357 = vlaneseq
        %v358 = vshrl.u32 %v357, 7
        %v359 = vsub.s32 0, %v358
        %v360 = vrot.slane %v272, %v359
        %v361 = vlaneseq
        %v362 = vshrl.u32 %v361, 7
        %v363 = vsub.s32 1, %v362
        %v364 = vrot.slane %v272, %v363
        %v367 = vmul.f32 %v355, %v360
        %v368 = vmul.f32 %v354, %v364
        %369 = vst [vmem:[#allocation2 + $0x30] sm:$0xff] %v367
        %370 = vst [vmem:[#allocation2 + $0x38] sm:$0xff] %v368
        %371 = vst [vmem:[#allocation2 + $0x40] sm:$0xff] %v279
        %372 = vst [vmem:[#allocation2 + $0x48] sm:$0xff] %v280
        %373 = vrot.lane.b32.xlu0 %v279, 127
        %v374 = vpop.permute.xlu0 %373
        %375 = vrot.lane.b32.xlu0 %v280, 127
        %v376 = vpop.permute.xlu0 %375
        %vm377 = vcmp.lt.s32.totalorder %v286, 127
        %v378 = vsel %vm377, %v374, %v376
        %v379 = vsel %vm377, %v376, %v374
        %v381 = vlaneseq
        %v382 = vshrl.u32 %v381, 7
        %v383 = vsub.s32 0, %v382
        %v384 = vrot.slane %v274, %v383
        %v385 = vlaneseq
        %v386 = vshrl.u32 %v385, 7
        %v387 = vsub.s32 1, %v386
        %v388 = vrot.slane %v274, %v387
        %v391 = vmul.f32 %v378, %v384
        %v392 = vmul.f32 %v379, %v388
        %393 = vst [vmem:[#allocation2 + $0x50] sm:$0xff] %v391
        %394 = vst [vmem:[#allocation2 + $0x58] sm:$0xff] %v392
        %395 = vrot.lane.b32.xlu0 %v279, 113
        %v396 = vpop.permute.xlu0 %395
        %397 = vrot.lane.b32.xlu0 %v280, 113
        %v398 = vpop.permute.xlu0 %397
        %vm399 = vcmp.lt.s32.totalorder %v286, 113
        %v400 = vsel %vm399, %v396, %v398
        %v401 = vsel %vm399, %v398, %v396
        %v403 = vlaneseq
        %v404 = vshrl.u32 %v403, 7
        %v405 = vsub.s32 0, %v404
        %v406 = vrot.slane %v277, %v405
        %v407 = vlaneseq
        %v408 = vshrl.u32 %v407, 7
        %v409 = vsub.s32 1, %v408
        %v410 = vrot.slane %v277, %v409
        %v413 = vmul.f32 %v400, %v406
        %v414 = vmul.f32 %v401, %v410
        %415 = vst [vmem:[#allocation2 + $0x60] sm:$0xff] %v413
        %416 = vst [vmem:[#allocation2 + $0x68] sm:$0xff] %v414
        %417 = vrot.lane.b32.xlu0 %v279, 112
        %v418 = vpop.permute.xlu0 %417
        %419 = vrot.lane.b32.xlu0 %v280, 112
        %v420 = vpop.permute.xlu0 %419
        %vm421 = vcmp.lt.s32.totalorder %v286, 112
        %v422 = vsel %vm421, %v418, %v420
        %v423 = vsel %vm421, %v420, %v418
        %v425 = vlaneseq
        %v426 = vshrl.u32 %v425, 7
        %v427 = vsub.s32 0, %v426
        %v428 = vrot.slane %v270, %v427
        %v429 = vlaneseq
        %v430 = vshrl.u32 %v429, 7
        %v431 = vsub.s32 1, %v430
        %v432 = vrot.slane %v270, %v431
        %v435 = vmul.f32 %v422, %v428
        %v436 = vmul.f32 %v423, %v432
        %437 = vst [vmem:[#allocation2 + $0x70] sm:$0xff] %v435
        %438 = vst [vmem:[#allocation2 + $0x78] sm:$0xff] %v436
        %439 = vrot.lane.b32.xlu0 %v279, 111
        %v440 = vpop.permute.xlu0 %439
        %441 = vrot.lane.b32.xlu0 %v280, 111
        %v442 = vpop.permute.xlu0 %441
        %vm443 = vcmp.lt.s32.totalorder %v286, 111
        %v444 = vsel %vm443, %v440, %v442
        %v445 = vsel %vm443, %v442, %v440
        %v447 = vlaneseq
        %v448 = vshrl.u32 %v447, 7
        %v449 = vsub.s32 0, %v448
        %v450 = vrot.slane %v278, %v449
        %v451 = vlaneseq
        %v452 = vshrl.u32 %v451, 7
        %v453 = vsub.s32 1, %v452
        %v454 = vrot.slane %v278, %v453
        %v457 = vmul.f32 %v444, %v450
        %v458 = vmul.f32 %v445, %v454
        %459 = vst [vmem:[#allocation2 + $0x80] sm:$0xff] %v457
        %460 = vst [vmem:[#allocation2 + $0x88] sm:$0xff] %v458
        %v461 = vld [vmem:[%s1] sm:$0xff]
        %v462 = vld [vmem:[#allocation2] sm:$0xff]
        %v463 = vld [vmem:[#allocation2 + $0x8] sm:$0xff]
        %v464 = vld [vmem:[#allocation2 + $0x10] sm:$0xff]
        %v465 = vld [vmem:[#allocation2 + $0x18] sm:$0xff]
        %v466 = vld [vmem:[#allocation2 + $0x20] sm:$0xff]
        %v467 = vld [vmem:[#allocation2 + $0x28] sm:$0xff]
        %v468 = vld [vmem:[#allocation2 + $0x30] sm:$0xff]
        %v469 = vld [vmem:[#allocation2 + $0x38] sm:$0xff]
        %v470 = vld [vmem:[#allocation2 + $0x40] sm:$0xff]
        %v471 = vld [vmem:[#allocation2 + $0x48] sm:$0xff]
        %v472 = vld [vmem:[#allocation2 + $0x50] sm:$0xff]
        %v473 = vld [vmem:[#allocation2 + $0x58] sm:$0xff]
        %v474 = vld [vmem:[#allocation2 + $0x60] sm:$0xff]
        %v475 = vld [vmem:[#allocation2 + $0x68] sm:$0xff]
        %v476 = vld [vmem:[#allocation2 + $0x70] sm:$0xff]
        %v477 = vld [vmem:[#allocation2 + $0x78] sm:$0xff]
        %v478 = vld [vmem:[#allocation2 + $0x80] sm:$0xff]
        %v479 = vld [vmem:[#allocation2 + $0x88] sm:$0xff]
        %v480 = vld [vmem:[%s2] sm:$0xff]
        %482 = vset.pattern.permute.xlu0 0
        %483 = vperm.xlu0 %482, %v480
        %v484 = vpop.permute.xlu0 %483
        %vm486 = vcmask 588800
        %v488 = vsel %vm486, %v461, 0
        %490 = vmatprep.subr.mxu0 %v463
        %491 = vmatpush1.msra.mxu0 %v462
        %492 = vmatprep.subr.mxu0 %v465
        %493 = vmatpush1.msra.mxu0 %v464
        %494 = vmatprep.subr.mxu0 %v467
        %495 = vmatpush1.msra.mxu0 %v466
        %496 = vmatprep.subr.mxu0 %v469
        %497 = vmatpush1.msra.mxu0 %v468
        %498 = vmatprep.subr.mxu0 %v471
        %499 = vmatpush1.msra.mxu0 %v470
        %500 = vmatprep.subr.mxu0 %v473
        %501 = vmatpush1.msra.mxu0 %v472
        %502 = vmatprep.subr.mxu0 %v475
        %503 = vmatpush1.msra.mxu0 %v474
        %504 = vmatprep.subr.mxu0 %v477
        %505 = vmatpush1.msra.mxu0 %v476
        %506 = vmatprep.subr.mxu0 %v479
        %507 = vmatpush1.msra.mxu0 %v478
        %508 = vmatprep.subr.mxu0 0.0
        %509 = vmatpush1.msra.mxu0 0.0
        %510 = vmatprep.subr.mxu0 0.0
        %511 = vmatpush1.msra.mxu0 0.0
        %512 = vmatprep.subr.mxu0 0.0
        %513 = vmatpush1.msra.mxu0 0.0
        %514 = vmatprep.subr.mxu0 0.0
        %515 = vmatpush1.msra.mxu0 0.0
        %516 = vmatprep.subr.mxu0 0.0
        %517 = vmatpush1.msra.mxu0 0.0
        %518 = vmatprep.subr.mxu0 0.0
        %519 = vmatpush1.msra.mxu0 0.0
        %520 = vmatprep.subr.mxu0 0.0
        %521 = vmatpush1.msra.mxu0 0.0
        %522 = vmatprep.subr.mxu0 0.0
        %523 = vmatpush1.msra.mxu0 0.0
        %524 = vmatprep.subr.mxu0 0.0
        %525 = vmatpush1.msra.mxu0 0.0
        %526 = vmatprep.subr.mxu0 0.0
        %527 = vmatpush1.msra.mxu0 0.0
        %528 = vmatprep.subr.mxu0 0.0
        %529 = vmatpush1.msra.mxu0 0.0
        %530 = vmatprep.subr.mxu0 0.0
        %531 = vmatpush1.msra.mxu0 0.0
        %532 = vmatprep.subr.mxu0 0.0
        %533 = vmatpush1.msra.mxu0 0.0
        %534 = vmatprep.subr.mxu0 0.0
        %535 = vmatpush1.msra.mxu0 0.0
        %536 = vmatprep.subr.mxu0 0.0
        %537 = vmatpush1.msra.mxu0 0.0
        %538 = vmatprep.subr.mxu0 0.0
        %539 = vmatpush1.msra.mxu0 0.0
        %540 = vmatprep.subr.mxu0 0.0
        %541 = vmatpush1.msra.mxu0 0.0
        %542 = vmatprep.subr.mxu0 0.0
        %543 = vmatpush1.msra.mxu0 0.0
        %544 = vmatprep.subr.mxu0 0.0
        %545 = vmatpush1.msra.mxu0 0.0
        %546 = vmatprep.subr.mxu0 0.0
        %547 = vmatpush1.msra.mxu0 0.0
        %548 = vmatprep.subr.mxu0 0.0
        %549 = vmatpush1.msra.mxu0 0.0
        %550 = vmatprep.subr.mxu0 0.0
        %551 = vmatpush1.msra.mxu0 0.0
        %552 = vmatprep.subr.mxu0 0.0
        %553 = vmatpush1.msra.mxu0 0.0
        %554 = vmatprep.mubr.f32.mxu0 0.0
        %555 = vmatmul.mubr.f32.gmra.mrb[0].mxu0 %v488
        %v556 = vpop.f32.mrb[0].mxu0
        %v557 = vadd.f32 %v484, %v556
        %v558 = vpop.f32.mrb[0].mxu0
        %v559 = vadd.f32 %v484, %v558
        %560 = vdwg.mxu0
        %v561 = vmax.f32 %v557, 0.0
        %v562 = vmax.f32 %v559, 0.0
        %563 = vrot.lane.b32.xlu0 %v561, 17
        %v564 = vpop.permute.xlu0 %563
        %565 = vrot.lane.b32.xlu0 %v562, 17
        %v566 = vpop.permute.xlu0 %565
        %v567 = vsel %vm287, %v564, %v566
        %v568 = vsel %vm287, %v566, %v564
        %v569 = vmul.f32 %v568, %v294
        %v570 = vmul.f32 %v567, %v298
        %571 = vst [vmem:[#allocation3] sm:$0xff] %v569
        %572 = vst [vmem:[#allocation3 + $0x8] sm:$0xff] %v570
        %573 = vrot.lane.b32.xlu0 %v561, 16
        %v574 = vpop.permute.xlu0 %573
        %575 = vrot.lane.b32.xlu0 %v562, 16
        %v576 = vpop.permute.xlu0 %575
        %v577 = vsel %vm309, %v574, %v576
        %v578 = vsel %vm309, %v576, %v574
        %v579 = vmul.f32 %v578, %v316
        %v580 = vmul.f32 %v577, %v320
        %581 = vst [vmem:[#allocation3 + $0x10] sm:$0xff] %v579
        %582 = vst [vmem:[#allocation3 + $0x18] sm:$0xff] %v580
        %583 = vrot.lane.b32.xlu0 %v561, 15
        %v584 = vpop.permute.xlu0 %583
        %585 = vrot.lane.b32.xlu0 %v562, 15
        %v586 = vpop.permute.xlu0 %585
        %v587 = vsel %vm331, %v584, %v586
        %v588 = vsel %vm331, %v586, %v584
        %v589 = vmul.f32 %v588, %v338
        %v590 = vmul.f32 %v587, %v342
        %591 = vst [vmem:[#allocation3 + $0x20] sm:$0xff] %v589
        %592 = vst [vmem:[#allocation3 + $0x28] sm:$0xff] %v590
        %593 = vrot.lane.b32.xlu0 %v561, 1
        %v594 = vpop.permute.xlu0 %593
        %595 = vrot.lane.b32.xlu0 %v562, 1
        %v596 = vpop.permute.xlu0 %595
        %v597 = vsel %vm353, %v594, %v596
        %v598 = vsel %vm353, %v596, %v594
        %v599 = vmul.f32 %v598, %v360
        %v600 = vmul.f32 %v597, %v364
        %601 = vst [vmem:[#allocation3 + $0x30] sm:$0xff] %v599
        %602 = vst [vmem:[#allocation3 + $0x38] sm:$0xff] %v600
        %603 = vst [vmem:[#allocation3 + $0x40] sm:$0xff] %v561
        %604 = vst [vmem:[#allocation3 + $0x48] sm:$0xff] %v562
        %605 = vrot.lane.b32.xlu0 %v561, 127
        %v606 = vpop.permute.xlu0 %605
        %607 = vrot.lane.b32.xlu0 %v562, 127
        %v608 = vpop.permute.xlu0 %607
        %v609 = vsel %vm377, %v606, %v608
        %v610 = vsel %vm377, %v608, %v606
        %v611 = vmul.f32 %v609, %v384
        %v612 = vmul.f32 %v610, %v388
        %613 = vst [vmem:[#allocation3 + $0x50] sm:$0xff] %v611
        %614 = vst [vmem:[#allocation3 + $0x58] sm:$0xff] %v612
        %615 = vrot.lane.b32.xlu0 %v561, 113
        %v616 = vpop.permute.xlu0 %615
        %617 = vrot.lane.b32.xlu0 %v562, 113
        %v618 = vpop.permute.xlu0 %617
        %v619 = vsel %vm399, %v616, %v618
        %v620 = vsel %vm399, %v618, %v616
        %v621 = vmul.f32 %v619, %v406
        %v622 = vmul.f32 %v620, %v410
        %623 = vst [vmem:[#allocation3 + $0x60] sm:$0xff] %v621
        %624 = vst [vmem:[#allocation3 + $0x68] sm:$0xff] %v622
        %625 = vrot.lane.b32.xlu0 %v561, 112
        %v626 = vpop.permute.xlu0 %625
        %627 = vrot.lane.b32.xlu0 %v562, 112
        %v628 = vpop.permute.xlu0 %627
        %v629 = vsel %vm421, %v626, %v628
        %v630 = vsel %vm421, %v628, %v626
        %v631 = vmul.f32 %v629, %v428
        %v632 = vmul.f32 %v630, %v432
        %633 = vst [vmem:[#allocation3 + $0x70] sm:$0xff] %v631
        %634 = vst [vmem:[#allocation3 + $0x78] sm:$0xff] %v632
        %635 = vrot.lane.b32.xlu0 %v561, 111
        %v636 = vpop.permute.xlu0 %635
        %637 = vrot.lane.b32.xlu0 %v562, 111
        %v638 = vpop.permute.xlu0 %637
        %v639 = vsel %vm443, %v636, %v638
        %v640 = vsel %vm443, %v638, %v636
        %v641 = vmul.f32 %v639, %v450
        %v642 = vmul.f32 %v640, %v454
        %643 = vst [vmem:[#allocation3 + $0x80] sm:$0xff] %v641
        %644 = vst [vmem:[#allocation3 + $0x88] sm:$0xff] %v642
        %645 = vst [vmem:[#allocation3 + $0x90] sm:$0xff] %v279
        %646 = vst [vmem:[#allocation3 + $0x98] sm:$0xff] %v280
        %v647 = vld [vmem:[%s3] sm:$0xff]
        %v648 = vld [vmem:[#allocation3] sm:$0xff]
        %v649 = vld [vmem:[#allocation3 + $0x8] sm:$0xff]
        %v650 = vld [vmem:[#allocation3 + $0x10] sm:$0xff]
        %v651 = vld [vmem:[#allocation3 + $0x18] sm:$0xff]
        %v652 = vld [vmem:[#allocation3 + $0x20] sm:$0xff]
        %v653 = vld [vmem:[#allocation3 + $0x28] sm:$0xff]
        %v654 = vld [vmem:[#allocation3 + $0x30] sm:$0xff]
        %v655 = vld [vmem:[#allocation3 + $0x38] sm:$0xff]
        %v656 = vld [vmem:[#allocation3 + $0x40] sm:$0xff]
        %v657 = vld [vmem:[#allocation3 + $0x48] sm:$0xff]
        %v658 = vld [vmem:[#allocation3 + $0x50] sm:$0xff]
        %v659 = vld [vmem:[#allocation3 + $0x58] sm:$0xff]
        %v660 = vld [vmem:[#allocation3 + $0x60] sm:$0xff]
        %v661 = vld [vmem:[#allocation3 + $0x68] sm:$0xff]
        %v662 = vld [vmem:[#allocation3 + $0x70] sm:$0xff]
        %v663 = vld [vmem:[#allocation3 + $0x78] sm:$0xff]
        %v664 = vld [vmem:[#allocation3 + $0x80] sm:$0xff]
        %v665 = vld [vmem:[#allocation3 + $0x88] sm:$0xff]
        %v666 = vld [vmem:[#allocation3 + $0x90] sm:$0xff]
        %v667 = vld [vmem:[#allocation3 + $0x98] sm:$0xff]
        %v668 = vld [vmem:[%s4] sm:$0xff]
        %670 = vset.pattern.permute.xlu0 0
        %671 = vperm.xlu0 %670, %v668
        %v672 = vpop.permute.xlu0 %671
        %vm674 = vcmask 654336
        %v676 = vsel %vm674, %v647, 0
        %678 = vmatprep.subr.mxu0 %v649
        %679 = vmatpush1.msra.mxu0 %v648
        %680 = vmatprep.subr.mxu0 %v651
        %681 = vmatpush1.msra.mxu0 %v650
        %682 = vmatprep.subr.mxu0 %v653
        %683 = vmatpush1.msra.mxu0 %v652
        %684 = vmatprep.subr.mxu0 %v655
        %685 = vmatpush1.msra.mxu0 %v654
        %686 = vmatprep.subr.mxu0 %v657
        %687 = vmatpush1.msra.mxu0 %v656
        %688 = vmatprep.subr.mxu0 %v659
        %689 = vmatpush1.msra.mxu0 %v658
        %690 = vmatprep.subr.mxu0 %v661
        %691 = vmatpush1.msra.mxu0 %v660
        %692 = vmatprep.subr.mxu0 %v663
        %693 = vmatpush1.msra.mxu0 %v662
        %694 = vmatprep.subr.mxu0 %v665
        %695 = vmatpush1.msra.mxu0 %v664
        %696 = vmatprep.subr.mxu0 %v667
        %697 = vmatpush1.msra.mxu0 %v666
        %698 = vmatprep.subr.mxu0 0.0
        %699 = vmatpush1.msra.mxu0 0.0
        %700 = vmatprep.subr.mxu0 0.0
        %701 = vmatpush1.msra.mxu0 0.0
        %702 = vmatprep.subr.mxu0 0.0
        %703 = vmatpush1.msra.mxu0 0.0
        %704 = vmatprep.subr.mxu0 0.0
        %705 = vmatpush1.msra.mxu0 0.0
        %706 = vmatprep.subr.mxu0 0.0
        %707 = vmatpush1.msra.mxu0 0.0
        %708 = vmatprep.subr.mxu0 0.0
        %709 = vmatpush1.msra.mxu0 0.0
        %710 = vmatprep.subr.mxu0 0.0
        %711 = vmatpush1.msra.mxu0 0.0
        %712 = vmatprep.subr.mxu0 0.0
        %713 = vmatpush1.msra.mxu0 0.0
        %714 = vmatprep.subr.mxu0 0.0
        %715 = vmatpush1.msra.mxu0 0.0
        %716 = vmatprep.subr.mxu0 0.0
        %717 = vmatpush1.msra.mxu0 0.0
        %718 = vmatprep.subr.mxu0 0.0
        %719 = vmatpush1.msra.mxu0 0.0
        %720 = vmatprep.subr.mxu0 0.0
        %721 = vmatpush1.msra.mxu0 0.0
        %722 = vmatprep.subr.mxu0 0.0
        %723 = vmatpush1.msra.mxu0 0.0
        %724 = vmatprep.subr.mxu0 0.0
        %725 = vmatpush1.msra.mxu0 0.0
        %726 = vmatprep.subr.mxu0 0.0
        %727 = vmatpush1.msra.mxu0 0.0
        %728 = vmatprep.subr.mxu0 0.0
        %729 = vmatpush1.msra.mxu0 0.0
        %730 = vmatprep.subr.mxu0 0.0
        %731 = vmatpush1.msra.mxu0 0.0
        %732 = vmatprep.subr.mxu0 0.0
        %733 = vmatpush1.msra.mxu0 0.0
        %734 = vmatprep.subr.mxu0 0.0
        %735 = vmatpush1.msra.mxu0 0.0
        %736 = vmatprep.subr.mxu0 0.0
        %737 = vmatpush1.msra.mxu0 0.0
        %738 = vmatprep.subr.mxu0 0.0
        %739 = vmatpush1.msra.mxu0 0.0
        %740 = vmatprep.subr.mxu0 0.0
        %741 = vmatpush1.msra.mxu0 0.0
        %742 = vmatprep.mubr.f32.mxu0 0.0
        %743 = vmatmul.mubr.f32.gmra.mrb[0].mxu0 %v676
        %v744 = vpop.f32.mrb[0].mxu0
        %v745 = vadd.f32 %v672, %v744
        %v746 = vpop.f32.mrb[0].mxu0
        %v747 = vadd.f32 %v672, %v746
        %748 = vdwg.mxu0
        %v749 = vmax.f32 %v745, 0.0
        %v750 = vmax.f32 %v747, 0.0
        %751 = vst [vmem:[%s267] sm:$0xff] %v749
        %752 = vst [vmem:[%s267 + $0x8] sm:$0xff] %v750
        %s753 = sand.u32 %s162, 1
        %s754 = scalar_lea.sflag [#allocation6], %s753
        %s755 = sand.u32 %s162, 1
        %s756 = smul.addr %s755, 16
        %s757 = scalar_lea.vmem [#allocation7], %s756
        // Predicated region
        $region49: #{tpu_custom_call.1} parent=43 // pred_check
          %p758 = pneg %p172
        $region50: #{tpu_custom_call.1} parent=43 // pred_check_branch
          %760 = sbr.rel (%p758) target = $region52
        $region51: #{tpu_custom_call.1} parent=43 // pred_region
          %s762 = ssub.s32 256, 256
          %763 = vsyncadd %s754, %s762
          %s764 = smul.addr %s23, 2
          %s765 = smul.addr %s764, 128
          %s766 = scalar_lea.hbm %s6, %s765
          %s768 = sshll.u32 %s757, 4
          %s769 = int_to_ptr.vmem [resolvable:$true] %s768
          %771 = dma.vmem_to_hbm [thread:$0]  %s769, 256, %s766, %s754
        $region52: #{tpu_custom_call.1} parent=43 // pred_fallthru
          _
      $region44: #{tpu_custom_call.1} parent=5 // pred_fallthru
        _
      %p772 = scmp.le.s32.totalorder 2, %s18
      // Predicated region
      $region53: #{tpu_custom_call.1} parent=5 // pred_check
        %p773 = pneg %p772
      $region54: #{tpu_custom_call.1} parent=5 // pred_check_branch
        %775 = sbr.rel (%p773) target = $region56
      $region55: #{tpu_custom_call.1} parent=5 // pred_region
        %s776 = ssub.s32 %s18, 2
        // Predicated region
        $region57: #{tpu_custom_call.1} parent=55 // pred_check
          %p777 = pneg %p178
        $region58: #{tpu_custom_call.1} parent=55 // pred_check_branch
          %779 = sbr.rel (%p777) target = $region60
        $region59: #{tpu_custom_call.1} parent=55 // pred_region
          %s780 = sand.u32 %s163, 1
          %s781 = scalar_lea.sflag [#allocation6], %s780
          %s782 = sand.u32 %s163, 1
          %s783 = smul.addr %s782, 16
          %s784 = scalar_lea.vmem [#allocation7], %s783
          %785 = dma.done %s781, 256
        $region60: #{tpu_custom_call.1} parent=55 // pred_fallthru
          _
      $region56: #{tpu_custom_call.1} parent=5 // pred_fallthru
        _
    $region6: #{tpu_custom_call.1} parent=1 // loop_footer
      %s22 = sadd.s32 1, %s18
    $region7: #{tpu_custom_call.1} parent=1 // loop_footer_branch
      %17 = sbr.rel target = $region3
    $region8: #{tpu_custom_call.1} parent=1 // loop_exit
      _
    %786 = vsyncpa [#allocation5], 1
    %s787 = scalar_lea.sflag [#allocation5], 1
    %788 = vsyncpa %s787, 1
    %789 = vsyncpa [#allocation6], 1
    %s790 = scalar_lea.sflag [#allocation6], 1
    %791 = vsyncpa %s790, 1

</llo_original>
